<compile_context>
chip_gen: v5e
topology: v5e:2x2
jax: 0.10.0
libtpu: 0.0.40
codegen_flags: <defaults>
</compile_context>

<pallas_src>
import jax
import jax.numpy as jnp
from jax.experimental import pallas as pl
from jax.experimental.pallas import tpu as pltpu


def _dma_flatten_kernel(x_hbm, o_hbm, sem):
    # Single HBM->HBM DMA of the whole (already reshaped) buffer.
    copy = pltpu.make_async_copy(x_hbm, o_hbm, sem)
    copy.start()
    copy.wait()


def flatten(x, materialize=False):
    """Equivalent of torch `input.view(input.size(0), -1)`.

    Default: free, metadata-only reshape (no kernel, zero HBM traffic).
    materialize=True: force an explicit Pallas HBM->HBM DMA into a fresh
    buffer (kept only for callers that require a materialized copy).
    """
    n = x.shape[0]
    flat = 1
    for d in x.shape[1:]:
        flat *= d

    # Row-major (N, C, H, W) -> (N, C*H*W) matches torch .view(N, -1) order
    # exactly and is a zero-cost view in XLA.
    x2 = jnp.reshape(x, (n, flat))
    if not materialize:
        return x2

    itemsize = jnp.dtype(x.dtype).itemsize
    return pl.pallas_call(
        _dma_flatten_kernel,
        out_shape=jax.ShapeDtypeStruct((n, flat), x.dtype),
        in_specs=[pl.BlockSpec(memory_space=pl.ANY)],
        out_specs=pl.BlockSpec(memory_space=pl.ANY),
        scratch_shapes=[pltpu.SemaphoreType.DMA(())],
        cost_estimate=pl.CostEstimate(
            flops=0,
            transcendentals=0,
            bytes_accessed=2 * n * flat * itemsize,  # read + write
        ),
    )(x2)


if __name__ == "__main__":
    key = jax.random.PRNGKey(0)
    # Small shapes consistent with a conv feature map: N=2, C=4, H=W=16
    x = jax.random.normal(key, (2, 4, 16, 16), dtype=jnp.float32)

    # Pure-JAX reference (equivalent to torch .view(N, -1))
    ref = x.reshape(x.shape[0], -1)

    # Default path: free view, no kernel emitted.
    out_view = flatten(x)
    jax.block_until_ready(out_view)
    assert out_view.shape == (2, 4 * 16 * 16), out_view.shape
    assert out_view.dtype == x.dtype
    assert jnp.array_equal(out_view, ref), "mismatch vs reference (view path)"

    # Materialized path: exercises the Pallas HBM->HBM DMA kernel.
    out_copy = flatten(x, materialize=True)
    jax.block_until_ready(out_copy)
    assert out_copy.shape == (2, 4 * 16 * 16), out_copy.shape
    assert out_copy.dtype == x.dtype
    assert jnp.array_equal(out_copy, ref), "mismatch vs reference (DMA path)"

    print("KERNEL_OK")
</pallas_src>

<mosaic_0001>
module attributes {stable_mosaic.version = 11 : i64} {
  func.func @_dma_flatten_kernel(%arg0: memref<2x1024xf32, #tpu.memory_space<any>>, %arg1: memref<2x1024xf32, #tpu.memory_space<any>>, %arg2: memref<!tpu.dma_semaphore, #tpu.memory_space<semaphore_mem>>) attributes {dimension_semantics = [], scalar_prefetch = 0 : i64, scratch_operands = 1 : i64, tpu.core_type = #tpu.core_type<tc>} {
    tpu.enqueue_dma source(%arg0 : memref<2x1024xf32, #tpu.memory_space<any>>) target(%arg1 : memref<2x1024xf32, #tpu.memory_space<any>>) target_semaphore(%arg2 : memref<!tpu.dma_semaphore, #tpu.memory_space<semaphore_mem>>)
    tpu.wait_dma2 semaphore(%arg2 : memref<!tpu.dma_semaphore, #tpu.memory_space<semaphore_mem>>) src(%arg0 : memref<2x1024xf32, #tpu.memory_space<any>>) dst(%arg1 : memref<2x1024xf32, #tpu.memory_space<any>>)
    return
  }
}

</mosaic_0001>

<llo_original>
// kernel: tpu_custom_call.1
$region0: #{tpu_custom_call.1}
  #allocation0 [shape = 'u32[]', space=smem, size = 0x4, offset = 0x4, fixed_abs, tag = 'smem constant byte address 0x4 - core index']
  #allocation1 [shape = 'u32[72,128]{1,0:T(1,128)}', space=vmem, size = 0x9000, scoped, tag = 'internal scratch']
  #allocation2 [shape = 's32[1]{0}', space=sflag, size = 0x4, scoped, tag = 'scratch operand']
  #allocation3 [shape = 's32[]', space=sflag, size = 0x4, offset = 0, fixed_abs, tag = 'sflag constant byte address 0x0 - dummy sync flag']
  #allocation4 [shape = 'u32[0]{0}', space=smem, size = 0, offset = 0, fixed_abs, tag = 'smem constant byte address 0x0 - null']
  %s0 = inlined_call_operand.hbm [shape: f32[2,1024], index: 0, kind: input, shape index: {}]
  %s1 = inlined_call_operand.hbm [shape: f32[2,1024], index: 1, kind: output, shape index: {}]
  %s2 = sld [smem:[#allocation0]]
  $region2: #{tpu_custom_call.1} parent=0
    _
  %s4 = ssub.s32 1, %s2
  %s5 = scalar_select 0, %s4, %s2
  %s7 = sshll.u32 1, 14
  %s8 = sxor.u32 4294967295, %s7
  %s10 = sshll.u32 %s0, 4
  %s11 = int_to_ptr.hbm [resolvable:$true] %s10
  %s12 = sshll.u32 %s1, 4
  %s13 = int_to_ptr.hbm [resolvable:$true] %s12
  %16 = dma.general %s11, 256, %s13, [#allocation2], [#allocation3], [#allocation4], 0, 0
  %s17 = smul.u32 2, 1
  %s18 = smul.u32 %s17, 8
  %s19 = sshll.u32 %s18, 4
  %20 = dma.done [#allocation2], %s19
  %21 = vsyncmov [#allocation2]
  %s22 = vpop.sfrf %21
  %p23 = scmp.eq.s32.totalorder %s22, 0
  %p24 = pneg %p23
  %26 = shalt.err (%p24)

</llo_original>
